<compile_context>
chip_gen: v7x
topology: tpu7x:2x2x1
jax: 0.10.0
libtpu: 0.0.40
codegen_flags: <defaults>
</compile_context>

<pallas_src>
import jax
import jax.numpy as jnp
from jax.experimental import pallas as pl
from jax.experimental.pallas import tpu as pltpu

# Flat parameter layout (row-major, matching PyTorch nn.Linear weight shapes):
#   w1 (6,3) -> [0, 18)    b1 (6,) -> [18, 24)
#   w2 (3,6) -> [24, 42)   b2 (3,) -> [42, 45)
#   w3 (1,3) -> [45, 48)   b3 (1,) -> [48, 49)
_W1, _B1 = 0, 18
_W2, _B2 = 24, 42
_W3, _B3 = 45, 48
_NPARAMS = 49


def mlp_kernel(p_ref, x_ref, o_ref):
    """One batch tile.

    x_ref: (3, R, 128) -- three dense (R, 128) feature strips (batch on both
           the sublane and lane axes).
    o_ref: (R, 128)    -- dense output strip.
    All 39 MACs run on the VPU with scalar weights read once from SMEM.
    """
    # Hoist all 49 SMEM scalar reads to the top of the kernel.
    w1 = [[p_ref[_W1 + 3 * j + k] for k in range(3)] for j in range(6)]
    b1 = [p_ref[_B1 + j] for j in range(6)]
    w2 = [[p_ref[_W2 + 6 * j + k] for k in range(6)] for j in range(3)]
    b2 = [p_ref[_B2 + j] for j in range(3)]
    w3 = [p_ref[_W3 + k] for k in range(3)]
    b3 = p_ref[_B3]

    x = [x_ref[k] for k in range(3)]              # three dense (R, 128) strips

    # fc1 + relu  -> 6 hidden strips
    h1 = []
    for j in range(6):
        acc = x[0] * w1[j][0]
        acc = acc + x[1] * w1[j][1]
        acc = acc + x[2] * w1[j][2]
        h1.append(jnp.maximum(acc + b1[j], 0.0))

    # fc2 + relu  -> 3 hidden strips
    h2 = []
    for j in range(3):
        acc = h1[0] * w2[j][0]
        for k in range(1, 6):
            acc = acc + h1[k] * w2[j][k]
        h2.append(jnp.maximum(acc + b2[j], 0.0))

    # fc3 (no activation) -> 1 output strip
    out = h2[0] * w3[0]
    out = out + h2[1] * w3[1]
    out = out + h2[2] * w3[2]
    o_ref[...] = out + b3


def _round_up(a, m):
    return ((a + m - 1) // m) * m


def neural_network_forward(x, params, *, max_tile_rows=2048):
    """Forward pass matching the PyTorch module.

    x: (B, 3) float32
    params: dict of w1 (6,3), b1 (6,), w2 (3,6), b2 (3,), w3 (1,3), b3 (1,)
    returns: (B, 1) float32
    """
    B = x.shape[0]

    # Flatten all weights/biases into one small SMEM-resident vector.
    pflat = jnp.concatenate([
        params["w1"].reshape(-1), params["b1"].reshape(-1),
        params["w2"].reshape(-1), params["b2"].reshape(-1),
        params["w3"].reshape(-1), params["b3"].reshape(-1),
    ]).astype(jnp.float32)
    assert pflat.shape == (_NPARAMS,)

    # Batch mapped to (rows, 128): 128 lanes always; rows tiled in multiples
    # of 8 sublanes.  Tile size derived so padding waste stays < one tile and
    # big batches get multiple grid steps (v7x 2-TC sharding).
    rows_total = max(1, -(-B // 128))                 # ceil(B / 128)
    n_tiles = -(-rows_total // max_tile_rows)         # ceil
    tr = _round_up(-(-rows_total // n_tiles), 8)      # rows per tile, mult of 8
    rows_padded = _round_up(rows_total, tr)
    bp = rows_padded * 128

    # Single pad, then transpose/reshape to the dense (3, rows, 128) slab.
    xt = jnp.pad(x.astype(jnp.float32), ((0, bp - B), (0, 0)))   # (bp, 3)
    xt = xt.T.reshape(3, rows_padded, 128)

    grid = (rows_padded // tr,)

    out = pl.pallas_call(
        mlp_kernel,
        out_shape=jax.ShapeDtypeStruct((rows_padded, 128), jnp.float32),
        grid_spec=pltpu.PrefetchScalarGridSpec(
            num_scalar_prefetch=0,
            grid=grid,
            in_specs=[
                # 49 scalars, whole array in SMEM (no per-step VMEM DMA).
                pl.BlockSpec(memory_space=pltpu.MemorySpace.SMEM),
                # Dense batch tile, double-buffered by the Pallas pipeline.
                pl.BlockSpec((3, tr, 128), lambda i: (0, i, 0)),
            ],
            out_specs=pl.BlockSpec((tr, 128), lambda i: (i, 0)),
        ),
        compiler_params=pltpu.CompilerParams(
            dimension_semantics=("parallel",),     # shard tiles across TCs (v7x)
            vmem_limit_bytes=32 * 1024 * 1024,     # room for big double buffers
        ),
    )(pflat, xt)

    # (rows_padded, 128) -> (B, 1); row r, lane c is batch element r*128 + c.
    return out.reshape(bp)[:B].reshape(B, 1)


def init_params(key):
    """Deterministic parameter init matching PyTorch Linear shapes."""
    k1, k2, k3, k4, k5, k6 = jax.random.split(key, 6)
    return {
        "w1": jax.random.normal(k1, (6, 3), jnp.float32) * 0.5,
        "b1": jax.random.normal(k2, (6,), jnp.float32) * 0.1,
        "w2": jax.random.normal(k3, (3, 6), jnp.float32) * 0.5,
        "b2": jax.random.normal(k4, (3,), jnp.float32) * 0.1,
        "w3": jax.random.normal(k5, (1, 3), jnp.float32) * 0.5,
        "b3": jax.random.normal(k6, (1,), jnp.float32) * 0.1,
    }


def reference_forward(x, params):
    """Pure-JAX reference for correctness check."""
    h1 = jnp.maximum(x @ params["w1"].T + params["b1"], 0.0)
    h2 = jnp.maximum(h1 @ params["w2"].T + params["b2"], 0.0)
    return h2 @ params["w3"].T + params["b3"]


if __name__ == "__main__":
    key = jax.random.PRNGKey(0)
    kx, kp = jax.random.split(key)

    params = init_params(kp)

    # Small batch (single 8x128 tile, mostly padding).
    batch = 8
    x = jax.random.normal(kx, (batch, 3), jnp.float32)
    out = jax.block_until_ready(neural_network_forward(x, params))
    ref = reference_forward(x, params)
    assert out.shape == (batch, 1), out.shape
    assert jnp.allclose(out, ref, atol=1e-5, rtol=1e-5), (out, ref)

    # Batch that is not a multiple of 128 (single tile, ragged padding).
    x2 = jax.random.normal(kx, (300, 3), jnp.float32)
    out2 = jax.block_until_ready(neural_network_forward(x2, params))
    assert jnp.allclose(out2, reference_forward(x2, params), atol=1e-5, rtol=1e-5)

    # Batch spanning multiple grid steps (exercises the pipelined grid path).
    x3 = jax.random.normal(kx, (1500, 3), jnp.float32)
    out3 = jax.block_until_ready(
        neural_network_forward(x3, params, max_tile_rows=8))
    assert jnp.allclose(out3, reference_forward(x3, params), atol=1e-5, rtol=1e-5)

    print("KERNEL_OK")
</pallas_src>

<mosaic_0001>
module attributes {stable_mosaic.version = 11 : i64} {
  func.func @mlp_kernel(%arg0: i32, %arg1: memref<49xf32, #tpu.memory_space<smem>>, %arg2: memref<3x8x128xf32, #tpu.memory_space<vmem>>, %arg3: memref<8x128xf32, #tpu.memory_space<vmem>>) attributes {dimension_semantics = [#tpu.dimension_semantics<parallel>], iteration_bounds = array<i64: 1>, scalar_prefetch = 0 : i64, scratch_operands = 0 : i64, tpu.core_type = #tpu.core_type<tc>, window_params = [{transform_indices = @transform_0, window_bounds = array<i64: 49>}, {transform_indices = @transform_1, window_bounds = array<i64: 3, 8, 128>}, {transform_indices = @transform_2, window_bounds = array<i64: 8, 128>}]} {
    %c0 = arith.constant 0 : index
    %0 = memref.load %arg1[%c0] : memref<49xf32, #tpu.memory_space<smem>>
    %c1 = arith.constant 1 : index
    %1 = memref.load %arg1[%c1] : memref<49xf32, #tpu.memory_space<smem>>
    %c2 = arith.constant 2 : index
    %2 = memref.load %arg1[%c2] : memref<49xf32, #tpu.memory_space<smem>>
    %c3 = arith.constant 3 : index
    %3 = memref.load %arg1[%c3] : memref<49xf32, #tpu.memory_space<smem>>
    %c4 = arith.constant 4 : index
    %4 = memref.load %arg1[%c4] : memref<49xf32, #tpu.memory_space<smem>>
    %c5 = arith.constant 5 : index
    %5 = memref.load %arg1[%c5] : memref<49xf32, #tpu.memory_space<smem>>
    %c6 = arith.constant 6 : index
    %6 = memref.load %arg1[%c6] : memref<49xf32, #tpu.memory_space<smem>>
    %c7 = arith.constant 7 : index
    %7 = memref.load %arg1[%c7] : memref<49xf32, #tpu.memory_space<smem>>
    %c8 = arith.constant 8 : index
    %8 = memref.load %arg1[%c8] : memref<49xf32, #tpu.memory_space<smem>>
    %c9 = arith.constant 9 : index
    %9 = memref.load %arg1[%c9] : memref<49xf32, #tpu.memory_space<smem>>
    %c10 = arith.constant 10 : index
    %10 = memref.load %arg1[%c10] : memref<49xf32, #tpu.memory_space<smem>>
    %c11 = arith.constant 11 : index
    %11 = memref.load %arg1[%c11] : memref<49xf32, #tpu.memory_space<smem>>
    %c12 = arith.constant 12 : index
    %12 = memref.load %arg1[%c12] : memref<49xf32, #tpu.memory_space<smem>>
    %c13 = arith.constant 13 : index
    %13 = memref.load %arg1[%c13] : memref<49xf32, #tpu.memory_space<smem>>
    %c14 = arith.constant 14 : index
    %14 = memref.load %arg1[%c14] : memref<49xf32, #tpu.memory_space<smem>>
    %c15 = arith.constant 15 : index
    %15 = memref.load %arg1[%c15] : memref<49xf32, #tpu.memory_space<smem>>
    %c16 = arith.constant 16 : index
    %16 = memref.load %arg1[%c16] : memref<49xf32, #tpu.memory_space<smem>>
    %c17 = arith.constant 17 : index
    %17 = memref.load %arg1[%c17] : memref<49xf32, #tpu.memory_space<smem>>
    %c18 = arith.constant 18 : index
    %18 = memref.load %arg1[%c18] : memref<49xf32, #tpu.memory_space<smem>>
    %c19 = arith.constant 19 : index
    %19 = memref.load %arg1[%c19] : memref<49xf32, #tpu.memory_space<smem>>
    %c20 = arith.constant 20 : index
    %20 = memref.load %arg1[%c20] : memref<49xf32, #tpu.memory_space<smem>>
    %c21 = arith.constant 21 : index
    %21 = memref.load %arg1[%c21] : memref<49xf32, #tpu.memory_space<smem>>
    %c22 = arith.constant 22 : index
    %22 = memref.load %arg1[%c22] : memref<49xf32, #tpu.memory_space<smem>>
    %c23 = arith.constant 23 : index
    %23 = memref.load %arg1[%c23] : memref<49xf32, #tpu.memory_space<smem>>
    %c24 = arith.constant 24 : index
    %24 = memref.load %arg1[%c24] : memref<49xf32, #tpu.memory_space<smem>>
    %c25 = arith.constant 25 : index
    %25 = memref.load %arg1[%c25] : memref<49xf32, #tpu.memory_space<smem>>
    %c26 = arith.constant 26 : index
    %26 = memref.load %arg1[%c26] : memref<49xf32, #tpu.memory_space<smem>>
    %c27 = arith.constant 27 : index
    %27 = memref.load %arg1[%c27] : memref<49xf32, #tpu.memory_space<smem>>
    %c28 = arith.constant 28 : index
    %28 = memref.load %arg1[%c28] : memref<49xf32, #tpu.memory_space<smem>>
    %c29 = arith.constant 29 : index
    %29 = memref.load %arg1[%c29] : memref<49xf32, #tpu.memory_space<smem>>
    %c30 = arith.constant 30 : index
    %30 = memref.load %arg1[%c30] : memref<49xf32, #tpu.memory_space<smem>>
    %c31 = arith.constant 31 : index
    %31 = memref.load %arg1[%c31] : memref<49xf32, #tpu.memory_space<smem>>
    %c32 = arith.constant 32 : index
    %32 = memref.load %arg1[%c32] : memref<49xf32, #tpu.memory_space<smem>>
    %c33 = arith.constant 33 : index
    %33 = memref.load %arg1[%c33] : memref<49xf32, #tpu.memory_space<smem>>
    %c34 = arith.constant 34 : index
    %34 = memref.load %arg1[%c34] : memref<49xf32, #tpu.memory_space<smem>>
    %c35 = arith.constant 35 : index
    %35 = memref.load %arg1[%c35] : memref<49xf32, #tpu.memory_space<smem>>
    %c36 = arith.constant 36 : index
    %36 = memref.load %arg1[%c36] : memref<49xf32, #tpu.memory_space<smem>>
    %c37 = arith.constant 37 : index
    %37 = memref.load %arg1[%c37] : memref<49xf32, #tpu.memory_space<smem>>
    %c38 = arith.constant 38 : index
    %38 = memref.load %arg1[%c38] : memref<49xf32, #tpu.memory_space<smem>>
    %c39 = arith.constant 39 : index
    %39 = memref.load %arg1[%c39] : memref<49xf32, #tpu.memory_space<smem>>
    %c40 = arith.constant 40 : index
    %40 = memref.load %arg1[%c40] : memref<49xf32, #tpu.memory_space<smem>>
    %c41 = arith.constant 41 : index
    %41 = memref.load %arg1[%c41] : memref<49xf32, #tpu.memory_space<smem>>
    %c42 = arith.constant 42 : index
    %42 = memref.load %arg1[%c42] : memref<49xf32, #tpu.memory_space<smem>>
    %c43 = arith.constant 43 : index
    %43 = memref.load %arg1[%c43] : memref<49xf32, #tpu.memory_space<smem>>
    %c44 = arith.constant 44 : index
    %44 = memref.load %arg1[%c44] : memref<49xf32, #tpu.memory_space<smem>>
    %c45 = arith.constant 45 : index
    %45 = memref.load %arg1[%c45] : memref<49xf32, #tpu.memory_space<smem>>
    %c46 = arith.constant 46 : index
    %46 = memref.load %arg1[%c46] : memref<49xf32, #tpu.memory_space<smem>>
    %c47 = arith.constant 47 : index
    %47 = memref.load %arg1[%c47] : memref<49xf32, #tpu.memory_space<smem>>
    %c48 = arith.constant 48 : index
    %48 = memref.load %arg1[%c48] : memref<49xf32, #tpu.memory_space<smem>>
    %c0_0 = arith.constant 0 : index
    %c0_1 = arith.constant 0 : index
    %c0_2 = arith.constant 0 : index
    %49 = vector.load %arg2[%c0_0, %c0_1, %c0_2] : memref<3x8x128xf32, #tpu.memory_space<vmem>>, vector<1x8x128xf32>
    %50 = vector.shape_cast %49 : vector<1x8x128xf32> to vector<8x128xf32>
    %c1_3 = arith.constant 1 : index
    %c0_4 = arith.constant 0 : index
    %c0_5 = arith.constant 0 : index
    %51 = vector.load %arg2[%c1_3, %c0_4, %c0_5] : memref<3x8x128xf32, #tpu.memory_space<vmem>>, vector<1x8x128xf32>
    %52 = vector.shape_cast %51 : vector<1x8x128xf32> to vector<8x128xf32>
    %c2_6 = arith.constant 2 : index
    %c0_7 = arith.constant 0 : index
    %c0_8 = arith.constant 0 : index
    %53 = vector.load %arg2[%c2_6, %c0_7, %c0_8] : memref<3x8x128xf32, #tpu.memory_space<vmem>>, vector<1x8x128xf32>
    %54 = vector.shape_cast %53 : vector<1x8x128xf32> to vector<8x128xf32>
    %55 = vector.broadcast %0 : f32 to vector<8x128xf32>
    %56 = arith.mulf %50, %55 : vector<8x128xf32>
    %57 = vector.broadcast %1 : f32 to vector<8x128xf32>
    %58 = arith.mulf %52, %57 : vector<8x128xf32>
    %59 = arith.addf %56, %58 : vector<8x128xf32>
    %60 = vector.broadcast %2 : f32 to vector<8x128xf32>
    %61 = arith.mulf %54, %60 : vector<8x128xf32>
    %62 = arith.addf %59, %61 : vector<8x128xf32>
    %63 = vector.broadcast %18 : f32 to vector<8x128xf32>
    %64 = arith.addf %62, %63 : vector<8x128xf32>
    %cst = arith.constant 0.000000e+00 : f32
    %65 = vector.broadcast %cst : f32 to vector<8x128xf32>
    %66 = arith.maximumf %64, %65 : vector<8x128xf32>
    %67 = vector.broadcast %3 : f32 to vector<8x128xf32>
    %68 = arith.mulf %50, %67 : vector<8x128xf32>
    %69 = vector.broadcast %4 : f32 to vector<8x128xf32>
    %70 = arith.mulf %52, %69 : vector<8x128xf32>
    %71 = arith.addf %68, %70 : vector<8x128xf32>
    %72 = vector.broadcast %5 : f32 to vector<8x128xf32>
    %73 = arith.mulf %54, %72 : vector<8x128xf32>
    %74 = arith.addf %71, %73 : vector<8x128xf32>
    %75 = vector.broadcast %19 : f32 to vector<8x128xf32>
    %76 = arith.addf %74, %75 : vector<8x128xf32>
    %cst_9 = arith.constant 0.000000e+00 : f32
    %77 = vector.broadcast %cst_9 : f32 to vector<8x128xf32>
    %78 = arith.maximumf %76, %77 : vector<8x128xf32>
    %79 = vector.broadcast %6 : f32 to vector<8x128xf32>
    %80 = arith.mulf %50, %79 : vector<8x128xf32>
    %81 = vector.broadcast %7 : f32 to vector<8x128xf32>
    %82 = arith.mulf %52, %81 : vector<8x128xf32>
    %83 = arith.addf %80, %82 : vector<8x128xf32>
    %84 = vector.broadcast %8 : f32 to vector<8x128xf32>
    %85 = arith.mulf %54, %84 : vector<8x128xf32>
    %86 = arith.addf %83, %85 : vector<8x128xf32>
    %87 = vector.broadcast %20 : f32 to vector<8x128xf32>
    %88 = arith.addf %86, %87 : vector<8x128xf32>
    %cst_10 = arith.constant 0.000000e+00 : f32
    %89 = vector.broadcast %cst_10 : f32 to vector<8x128xf32>
    %90 = arith.maximumf %88, %89 : vector<8x128xf32>
    %91 = vector.broadcast %9 : f32 to vector<8x128xf32>
    %92 = arith.mulf %50, %91 : vector<8x128xf32>
    %93 = vector.broadcast %10 : f32 to vector<8x128xf32>
    %94 = arith.mulf %52, %93 : vector<8x128xf32>
    %95 = arith.addf %92, %94 : vector<8x128xf32>
    %96 = vector.broadcast %11 : f32 to vector<8x128xf32>
    %97 = arith.mulf %54, %96 : vector<8x128xf32>
    %98 = arith.addf %95, %97 : vector<8x128xf32>
    %99 = vector.broadcast %21 : f32 to vector<8x128xf32>
    %100 = arith.addf %98, %99 : vector<8x128xf32>
    %cst_11 = arith.constant 0.000000e+00 : f32
    %101 = vector.broadcast %cst_11 : f32 to vector<8x128xf32>
    %102 = arith.maximumf %100, %101 : vector<8x128xf32>
    %103 = vector.broadcast %12 : f32 to vector<8x128xf32>
    %104 = arith.mulf %50, %103 : vector<8x128xf32>
    %105 = vector.broadcast %13 : f32 to vector<8x128xf32>
    %106 = arith.mulf %52, %105 : vector<8x128xf32>
    %107 = arith.addf %104, %106 : vector<8x128xf32>
    %108 = vector.broadcast %14 : f32 to vector<8x128xf32>
    %109 = arith.mulf %54, %108 : vector<8x128xf32>
    %110 = arith.addf %107, %109 : vector<8x128xf32>
    %111 = vector.broadcast %22 : f32 to vector<8x128xf32>
    %112 = arith.addf %110, %111 : vector<8x128xf32>
    %cst_12 = arith.constant 0.000000e+00 : f32
    %113 = vector.broadcast %cst_12 : f32 to vector<8x128xf32>
    %114 = arith.maximumf %112, %113 : vector<8x128xf32>
    %115 = vector.broadcast %15 : f32 to vector<8x128xf32>
    %116 = arith.mulf %50, %115 : vector<8x128xf32>
    %117 = vector.broadcast %16 : f32 to vector<8x128xf32>
    %118 = arith.mulf %52, %117 : vector<8x128xf32>
    %119 = arith.addf %116, %118 : vector<8x128xf32>
    %120 = vector.broadcast %17 : f32 to vector<8x128xf32>
    %121 = arith.mulf %54, %120 : vector<8x128xf32>
    %122 = arith.addf %119, %121 : vector<8x128xf32>
    %123 = vector.broadcast %23 : f32 to vector<8x128xf32>
    %124 = arith.addf %122, %123 : vector<8x128xf32>
    %cst_13 = arith.constant 0.000000e+00 : f32
    %125 = vector.broadcast %cst_13 : f32 to vector<8x128xf32>
    %126 = arith.maximumf %124, %125 : vector<8x128xf32>
    %127 = vector.broadcast %24 : f32 to vector<8x128xf32>
    %128 = arith.mulf %66, %127 : vector<8x128xf32>
    %129 = vector.broadcast %25 : f32 to vector<8x128xf32>
    %130 = arith.mulf %78, %129 : vector<8x128xf32>
    %131 = arith.addf %128, %130 : vector<8x128xf32>
    %132 = vector.broadcast %26 : f32 to vector<8x128xf32>
    %133 = arith.mulf %90, %132 : vector<8x128xf32>
    %134 = arith.addf %131, %133 : vector<8x128xf32>
    %135 = vector.broadcast %27 : f32 to vector<8x128xf32>
    %136 = arith.mulf %102, %135 : vector<8x128xf32>
    %137 = arith.addf %134, %136 : vector<8x128xf32>
    %138 = vector.broadcast %28 : f32 to vector<8x128xf32>
    %139 = arith.mulf %114, %138 : vector<8x128xf32>
    %140 = arith.addf %137, %139 : vector<8x128xf32>
    %141 = vector.broadcast %29 : f32 to vector<8x128xf32>
    %142 = arith.mulf %126, %141 : vector<8x128xf32>
    %143 = arith.addf %140, %142 : vector<8x128xf32>
    %144 = vector.broadcast %42 : f32 to vector<8x128xf32>
    %145 = arith.addf %143, %144 : vector<8x128xf32>
    %cst_14 = arith.constant 0.000000e+00 : f32
    %146 = vector.broadcast %cst_14 : f32 to vector<8x128xf32>
    %147 = arith.maximumf %145, %146 : vector<8x128xf32>
    %148 = vector.broadcast %30 : f32 to vector<8x128xf32>
    %149 = arith.mulf %66, %148 : vector<8x128xf32>
    %150 = vector.broadcast %31 : f32 to vector<8x128xf32>
    %151 = arith.mulf %78, %150 : vector<8x128xf32>
    %152 = arith.addf %149, %151 : vector<8x128xf32>
    %153 = vector.broadcast %32 : f32 to vector<8x128xf32>
    %154 = arith.mulf %90, %153 : vector<8x128xf32>
    %155 = arith.addf %152, %154 : vector<8x128xf32>
    %156 = vector.broadcast %33 : f32 to vector<8x128xf32>
    %157 = arith.mulf %102, %156 : vector<8x128xf32>
    %158 = arith.addf %155, %157 : vector<8x128xf32>
    %159 = vector.broadcast %34 : f32 to vector<8x128xf32>
    %160 = arith.mulf %114, %159 : vector<8x128xf32>
    %161 = arith.addf %158, %160 : vector<8x128xf32>
    %162 = vector.broadcast %35 : f32 to vector<8x128xf32>
    %163 = arith.mulf %126, %162 : vector<8x128xf32>
    %164 = arith.addf %161, %163 : vector<8x128xf32>
    %165 = vector.broadcast %43 : f32 to vector<8x128xf32>
    %166 = arith.addf %164, %165 : vector<8x128xf32>
    %cst_15 = arith.constant 0.000000e+00 : f32
    %167 = vector.broadcast %cst_15 : f32 to vector<8x128xf32>
    %168 = arith.maximumf %166, %167 : vector<8x128xf32>
    %169 = vector.broadcast %36 : f32 to vector<8x128xf32>
    %170 = arith.mulf %66, %169 : vector<8x128xf32>
    %171 = vector.broadcast %37 : f32 to vector<8x128xf32>
    %172 = arith.mulf %78, %171 : vector<8x128xf32>
    %173 = arith.addf %170, %172 : vector<8x128xf32>
    %174 = vector.broadcast %38 : f32 to vector<8x128xf32>
    %175 = arith.mulf %90, %174 : vector<8x128xf32>
    %176 = arith.addf %173, %175 : vector<8x128xf32>
    %177 = vector.broadcast %39 : f32 to vector<8x128xf32>
    %178 = arith.mulf %102, %177 : vector<8x128xf32>
    %179 = arith.addf %176, %178 : vector<8x128xf32>
    %180 = vector.broadcast %40 : f32 to vector<8x128xf32>
    %181 = arith.mulf %114, %180 : vector<8x128xf32>
    %182 = arith.addf %179, %181 : vector<8x128xf32>
    %183 = vector.broadcast %41 : f32 to vector<8x128xf32>
    %184 = arith.mulf %126, %183 : vector<8x128xf32>
    %185 = arith.addf %182, %184 : vector<8x128xf32>
    %186 = vector.broadcast %44 : f32 to vector<8x128xf32>
    %187 = arith.addf %185, %186 : vector<8x128xf32>
    %cst_16 = arith.constant 0.000000e+00 : f32
    %188 = vector.broadcast %cst_16 : f32 to vector<8x128xf32>
    %189 = arith.maximumf %187, %188 : vector<8x128xf32>
    %190 = vector.broadcast %45 : f32 to vector<8x128xf32>
    %191 = arith.mulf %147, %190 : vector<8x128xf32>
    %192 = vector.broadcast %46 : f32 to vector<8x128xf32>
    %193 = arith.mulf %168, %192 : vector<8x128xf32>
    %194 = arith.addf %191, %193 : vector<8x128xf32>
    %195 = vector.broadcast %47 : f32 to vector<8x128xf32>
    %196 = arith.mulf %189, %195 : vector<8x128xf32>
    %197 = arith.addf %194, %196 : vector<8x128xf32>
    %198 = vector.broadcast %48 : f32 to vector<8x128xf32>
    %199 = arith.addf %197, %198 : vector<8x128xf32>
    %c0_17 = arith.constant 0 : index
    %c0_18 = arith.constant 0 : index
    %200 = vector.load %arg3[%c0_17, %c0_18] : memref<8x128xf32, #tpu.memory_space<vmem>>, vector<8x128xf32>
    tpu.vector_store %arg3[%c0_17, %c0_18], %199 {strides = array<i32>} : memref<8x128xf32, #tpu.memory_space<vmem>>, vector<8x128xf32>,
    return
  }
  func.func @transform_0(%arg0: i32) -> i32 {
    %c0_i32 = arith.constant 0 : i32
    %c0_i32_0 = arith.constant 0 : i32
    return %c0_i32 : i32
  }
  func.func @transform_1(%arg0: i32) -> (i32, i32, i32) {
    %c0_i32 = arith.constant 0 : i32
    %c0_i32_0 = arith.constant 0 : i32
    %c0_i32_1 = arith.constant 0 : i32
    return %c0_i32, %arg0, %c0_i32_0 : i32, i32, i32
  }
  func.func @transform_2(%arg0: i32) -> (i32, i32) {
    %c0_i32 = arith.constant 0 : i32
    %c0_i32_0 = arith.constant 0 : i32
    return %arg0, %c0_i32 : i32, i32
  }
}

</mosaic_0001>

<llo_original>
// kernel: tpu_custom_call.1
$region0: #{tpu_custom_call.1}
  #allocation0 [shape = 'u32[]', space=smem, size = 0x4, offset = 0x4, fixed_abs, tag = 'smem constant byte address 0x4 - core index']
  #allocation1 [shape = 'u32[144,128]{1,0:T(1,128)}', space=vmem, size = 0x12000, scoped, tag = 'internal scratch']
  %s0 = inlined_call_operand.hbm [shape: f32[49], index: 0, kind: input, shape index: {}]
  %s1 = inlined_call_operand.hbm [shape: f32[3,8,128], index: 1, kind: input, shape index: {}]
  %s2 = inlined_call_operand.hbm [shape: f32[8,128], index: 2, kind: output, shape index: {}]
  %s3 = sld [smem:[#allocation0]]
  $region26: #{tpu_custom_call.1} parent=0
    _
  %s5 = ssub.s32 1, %s3
  %s6 = scalar_select 0, %s5, %s3
  $region1: #{tpu_custom_call.1} parent=0
    #allocation2 [shape = 'u8[512]{0}', space=smem, size = 0x200, scoped, tag = 'input window, operand 0, single buffered']
    #allocation3 [shape = 's32[1]{0}', space=sflag, size = 0x4, scoped, tag = 'scoped memory for tpu_custom_call.1']
    #allocation4 [shape = 's32[1]{0}', space=sflag, size = 0x4, scoped, tag = 'scoped memory for tpu_custom_call.1']
    #allocation5 [shape = 's32[1]{0}', space=sflag, size = 0x4, scoped, tag = 'scoped memory for tpu_custom_call.1']
    #allocation6 [shape = 'u8[12288]{0}', space=vmem, size = 0x3000, scoped, tag = 'input window, operand 1, single buffered']
    #allocation7 [shape = 'u8[4096]{0}', space=vmem, size = 0x1000, scoped, tag = 'output window, operand 0, single buffered']
    %7 = vsyncpa [#allocation5], 0
    %8 = vsyncpa [#allocation3], 0
    %9 = vsyncpa [#allocation4], 0
    // Predicated region
    $region2: #{tpu_custom_call.1} parent=1 // pred_check
      _
    $region3: #{tpu_custom_call.1} parent=1 // pred_check_branch
      %11 = sbr.rel (0) target = $region5
    $region4: #{tpu_custom_call.1} parent=1 // pred_region
      %s13 = ssub.s32 16, 16
      %14 = vsyncadd [#allocation5], %s13
      %17 = dma.hbm_to_smem %s0, 16, [#allocation2], [#allocation5]
    $region5: #{tpu_custom_call.1} parent=1 // pred_fallthru
      _
    // Predicated region
    $region6: #{tpu_custom_call.1} parent=1 // pred_check
      _
    $region7: #{tpu_custom_call.1} parent=1 // pred_check_branch
      %19 = sbr.rel (0) target = $region9
    $region8: #{tpu_custom_call.1} parent=1 // pred_region
      %s21 = ssub.s32 384, 384
      %22 = vsyncadd [#allocation3], %s21
      %s23 = sshll.u32 [#allocation6], 4
      %s24 = int_to_ptr.vmem [resolvable:$true] %s23
      %29 = dma.hbm_to_vmem [thread:$0]  %s1, 384, %s24, [#allocation3], 128, 128, 8
    $region9: #{tpu_custom_call.1} parent=1 // pred_fallthru
      _
    // Predicated region
    $region10: #{tpu_custom_call.1} parent=1 // pred_check
      _
    $region11: #{tpu_custom_call.1} parent=1 // pred_check_branch
      %31 = sbr.rel (0) target = $region13
    $region12: #{tpu_custom_call.1} parent=1 // pred_region
      %32 = dma.done [#allocation5], 16
    $region13: #{tpu_custom_call.1} parent=1 // pred_fallthru
      _
    // Predicated region
    $region14: #{tpu_custom_call.1} parent=1 // pred_check
      _
    $region15: #{tpu_custom_call.1} parent=1 // pred_check_branch
      %34 = sbr.rel (0) target = $region17
    $region16: #{tpu_custom_call.1} parent=1 // pred_region
      %35 = dma.done [#allocation3], 384
    $region17: #{tpu_custom_call.1} parent=1 // pred_fallthru
      _
    %36 = sfence
    %s37 = sld [smem:[#allocation2]]
    %s38 = sld [smem:[#allocation2 + $0x1]]
    %s39 = sld [smem:[#allocation2 + $0x2]]
    %s40 = sld [smem:[#allocation2 + $0x3]]
    %s41 = sld [smem:[#allocation2 + $0x4]]
    %s42 = sld [smem:[#allocation2 + $0x5]]
    %s43 = sld [smem:[#allocation2 + $0x6]]
    %s44 = sld [smem:[#allocation2 + $0x7]]
    %s45 = sld [smem:[#allocation2 + $0x8]]
    %s46 = sld [smem:[#allocation2 + $0x9]]
    %s47 = sld [smem:[#allocation2 + $0xa]]
    %s48 = sld [smem:[#allocation2 + $0xb]]
    %s49 = sld [smem:[#allocation2 + $0xc]]
    %s50 = sld [smem:[#allocation2 + $0xd]]
    %s51 = sld [smem:[#allocation2 + $0xe]]
    %s52 = sld [smem:[#allocation2 + $0xf]]
    %s53 = sld [smem:[#allocation2 + $0x10]]
    %s54 = sld [smem:[#allocation2 + $0x11]]
    %s55 = sld [smem:[#allocation2 + $0x12]]
    %s56 = sld [smem:[#allocation2 + $0x13]]
    %s57 = sld [smem:[#allocation2 + $0x14]]
    %s58 = sld [smem:[#allocation2 + $0x15]]
    %s59 = sld [smem:[#allocation2 + $0x16]]
    %s60 = sld [smem:[#allocation2 + $0x17]]
    %s61 = sld [smem:[#allocation2 + $0x18]]
    %s62 = sld [smem:[#allocation2 + $0x19]]
    %s63 = sld [smem:[#allocation2 + $0x1a]]
    %s64 = sld [smem:[#allocation2 + $0x1b]]
    %s65 = sld [smem:[#allocation2 + $0x1c]]
    %s66 = sld [smem:[#allocation2 + $0x1d]]
    %s67 = sld [smem:[#allocation2 + $0x1e]]
    %s68 = sld [smem:[#allocation2 + $0x1f]]
    %s69 = sld [smem:[#allocation2 + $0x20]]
    %s70 = sld [smem:[#allocation2 + $0x21]]
    %s71 = sld [smem:[#allocation2 + $0x22]]
    %s72 = sld [smem:[#allocation2 + $0x23]]
    %s73 = sld [smem:[#allocation2 + $0x24]]
    %s74 = sld [smem:[#allocation2 + $0x25]]
    %s75 = sld [smem:[#allocation2 + $0x26]]
    %s76 = sld [smem:[#allocation2 + $0x27]]
    %s77 = sld [smem:[#allocation2 + $0x28]]
    %s78 = sld [smem:[#allocation2 + $0x29]]
    %s79 = sld [smem:[#allocation2 + $0x2a]]
    %s80 = sld [smem:[#allocation2 + $0x2b]]
    %s81 = sld [smem:[#allocation2 + $0x2c]]
    %s82 = sld [smem:[#allocation2 + $0x2d]]
    %s83 = sld [smem:[#allocation2 + $0x2e]]
    %s84 = sld [smem:[#allocation2 + $0x2f]]
    %s85 = sld [smem:[#allocation2 + $0x30]]
    %v86 = vld [vmem:[#allocation6] sm:$0xff]
    %s87 = scalar_lea.vmem [#allocation6], 8
    %v88 = vld [vmem:[%s87] sm:$0xff]
    %s89 = scalar_lea.vmem [#allocation6], 16
    %v90 = vld [vmem:[%s89] sm:$0xff]
    %v91 = vstv %s37
    %v92 = vmul.f32 %v86, %v91
    %v93 = vstv %s38
    %v94 = vmul.f32 %v88, %v93
    %v95 = vadd.f32 %v92, %v94
    %v96 = vstv %s39
    %v97 = vmul.f32 %v90, %v96
    %v98 = vadd.f32 %v95, %v97
    %v99 = vstv %s55
    %v100 = vadd.f32 %v98, %v99
    %v101 = vmax.f32 %v100, 0.0
    %v102 = vstv %s40
    %v103 = vmul.f32 %v86, %v102
    %v104 = vstv %s41
    %v105 = vmul.f32 %v88, %v104
    %v106 = vadd.f32 %v103, %v105
    %v107 = vstv %s42
    %v108 = vmul.f32 %v90, %v107
    %v109 = vadd.f32 %v106, %v108
    %v110 = vstv %s56
    %v111 = vadd.f32 %v109, %v110
    %v112 = vmax.f32 %v111, 0.0
    %v113 = vstv %s43
    %v114 = vmul.f32 %v86, %v113
    %v115 = vstv %s44
    %v116 = vmul.f32 %v88, %v115
    %v117 = vadd.f32 %v114, %v116
    %v118 = vstv %s45
    %v119 = vmul.f32 %v90, %v118
    %v120 = vadd.f32 %v117, %v119
    %v121 = vstv %s57
    %v122 = vadd.f32 %v120, %v121
    %v123 = vmax.f32 %v122, 0.0
    %v124 = vstv %s46
    %v125 = vmul.f32 %v86, %v124
    %v126 = vstv %s47
    %v127 = vmul.f32 %v88, %v126
    %v128 = vadd.f32 %v125, %v127
    %v129 = vstv %s48
    %v130 = vmul.f32 %v90, %v129
    %v131 = vadd.f32 %v128, %v130
    %v132 = vstv %s58
    %v133 = vadd.f32 %v131, %v132
    %v134 = vmax.f32 %v133, 0.0
    %v135 = vstv %s49
    %v136 = vmul.f32 %v86, %v135
    %v137 = vstv %s50
    %v138 = vmul.f32 %v88, %v137
    %v139 = vadd.f32 %v136, %v138
    %v140 = vstv %s51
    %v141 = vmul.f32 %v90, %v140
    %v142 = vadd.f32 %v139, %v141
    %v143 = vstv %s59
    %v144 = vadd.f32 %v142, %v143
    %v145 = vmax.f32 %v144, 0.0
    %v146 = vstv %s52
    %v147 = vmul.f32 %v86, %v146
    %v148 = vstv %s53
    %v149 = vmul.f32 %v88, %v148
    %v150 = vadd.f32 %v147, %v149
    %v151 = vstv %s54
    %v152 = vmul.f32 %v90, %v151
    %v153 = vadd.f32 %v150, %v152
    %v154 = vstv %s60
    %v155 = vadd.f32 %v153, %v154
    %v156 = vmax.f32 %v155, 0.0
    %v157 = vstv %s61
    %v158 = vmul.f32 %v101, %v157
    %v159 = vstv %s62
    %v160 = vmul.f32 %v112, %v159
    %v161 = vadd.f32 %v158, %v160
    %v162 = vstv %s63
    %v163 = vmul.f32 %v123, %v162
    %v164 = vadd.f32 %v161, %v163
    %v165 = vstv %s64
    %v166 = vmul.f32 %v134, %v165
    %v167 = vadd.f32 %v164, %v166
    %v168 = vstv %s65
    %v169 = vmul.f32 %v145, %v168
    %v170 = vadd.f32 %v167, %v169
    %v171 = vstv %s66
    %v172 = vmul.f32 %v156, %v171
    %v173 = vadd.f32 %v170, %v172
    %v174 = vstv %s79
    %v175 = vadd.f32 %v173, %v174
    %v176 = vmax.f32 %v175, 0.0
    %v177 = vstv %s67
    %v178 = vmul.f32 %v101, %v177
    %v179 = vstv %s68
    %v180 = vmul.f32 %v112, %v179
    %v181 = vadd.f32 %v178, %v180
    %v182 = vstv %s69
    %v183 = vmul.f32 %v123, %v182
    %v184 = vadd.f32 %v181, %v183
    %v185 = vstv %s70
    %v186 = vmul.f32 %v134, %v185
    %v187 = vadd.f32 %v184, %v186
    %v188 = vstv %s71
    %v189 = vmul.f32 %v145, %v188
    %v190 = vadd.f32 %v187, %v189
    %v191 = vstv %s72
    %v192 = vmul.f32 %v156, %v191
    %v193 = vadd.f32 %v190, %v192
    %v194 = vstv %s80
    %v195 = vadd.f32 %v193, %v194
    %v196 = vmax.f32 %v195, 0.0
    %v197 = vstv %s73
    %v198 = vmul.f32 %v101, %v197
    %v199 = vstv %s74
    %v200 = vmul.f32 %v112, %v199
    %v201 = vadd.f32 %v198, %v200
    %v202 = vstv %s75
    %v203 = vmul.f32 %v123, %v202
    %v204 = vadd.f32 %v201, %v203
    %v205 = vstv %s76
    %v206 = vmul.f32 %v134, %v205
    %v207 = vadd.f32 %v204, %v206
    %v208 = vstv %s77
    %v209 = vmul.f32 %v145, %v208
    %v210 = vadd.f32 %v207, %v209
    %v211 = vstv %s78
    %v212 = vmul.f32 %v156, %v211
    %v213 = vadd.f32 %v210, %v212
    %v214 = vstv %s81
    %v215 = vadd.f32 %v213, %v214
    %v216 = vmax.f32 %v215, 0.0
    %v217 = vstv %s82
    %v218 = vmul.f32 %v176, %v217
    %v219 = vstv %s83
    %v220 = vmul.f32 %v196, %v219
    %v221 = vadd.f32 %v218, %v220
    %v222 = vstv %s84
    %v223 = vmul.f32 %v216, %v222
    %v224 = vadd.f32 %v221, %v223
    %v225 = vstv %s85
    %v226 = vadd.f32 %v224, %v225
    %227 = vst [vmem:[#allocation7] sm:$0xff] %v226
    // Predicated region
    $region18: #{tpu_custom_call.1} parent=1 // pred_check
      _
    $region19: #{tpu_custom_call.1} parent=1 // pred_check_branch
      %229 = sbr.rel (0) target = $region21
    $region20: #{tpu_custom_call.1} parent=1 // pred_region
      %s231 = ssub.s32 128, 128
      %232 = vsyncadd [#allocation4], %s231
      %s234 = sshll.u32 [#allocation7], 4
      %s235 = int_to_ptr.vmem [resolvable:$true] %s234
      %237 = dma.vmem_to_hbm [thread:$0]  %s235, 128, %s2, [#allocation4]
    $region21: #{tpu_custom_call.1} parent=1 // pred_fallthru
      _
    // Predicated region
    $region22: #{tpu_custom_call.1} parent=1 // pred_check
      _
    $region23: #{tpu_custom_call.1} parent=1 // pred_check_branch
      %239 = sbr.rel (0) target = $region25
    $region24: #{tpu_custom_call.1} parent=1 // pred_region
      %240 = dma.done [#allocation4], 128
    $region25: #{tpu_custom_call.1} parent=1 // pred_fallthru
      _
    %241 = vsyncpa [#allocation3], 1
    %242 = vsyncpa [#allocation4], 1
    %243 = vsyncpa [#allocation5], 1

</llo_original>
